<compile_context>
chip_gen: v7x
topology: tpu7x:2x2x1
jax: 0.10.0
libtpu: 0.0.40
codegen_flags: <defaults>
</compile_context>

<pallas_src>
import math

import jax
import jax.numpy as jnp
import numpy as np
from jax.experimental import pallas as pl
from jax.experimental.pallas import tpu as pltpu

BLOCK_M_TARGET = 1024  # slab rows per grid step (each slab row holds W/K examples)


def _round_up(x: int, m: int) -> int:
    return ((x + m - 1) // m) * m


def _corn_kernel(logits_ref, d_ref, out_ref):
    """One grid step: lane-dense (block_m, W) slab -> (8, 128) partial loss sums.

    d_ref holds (y - task) per element (strictly negative for padded elements):
        mask  = d >= 0   (example participates in this binary task)
        label = d >  0   (binary target for this task)
    """
    x = logits_ref[...].astype(jnp.float32)          # (bm, W) upcast in-register
    d = d_ref[...].astype(jnp.int32)                 # (bm, W) int8 -> int32

    mask = d >= 0
    label = (d > 0).astype(jnp.float32)

    # Numerically stable log-sigmoid: min(x, 0) - log1p(exp(-|x|))   (EUP ops)
    logsig = jnp.minimum(x, 0.0) - jnp.log1p(jnp.exp(-jnp.abs(x)))
    # logsig*t + (logsig - x)*(1 - t)  ==  logsig - x*(1 - t)
    per = logsig - x * (1.0 - label)
    contrib = jnp.where(mask, per, 0.0)              # (bm, W)

    bm, w = contrib.shape
    # Fold lane groups of 128 together (static, vreg-aligned slices -> pure VPU adds).
    if w > 128:
        folded = contrib[:, 0:128]
        for j in range(1, w // 128):
            folded = folded + contrib[:, j * 128:(j + 1) * 128]
        contrib = folded                             # (bm, 128)
    # Fold sublane groups of 8 together (layout-free reshape -> VPU adds, no XLU
    # lane reduction inside the kernel).
    out_ref[0] = jnp.sum(contrib.reshape(bm // 8, 8, 128), axis=0)


def corn_loss_pallas(logits: jax.Array, y: jax.Array, num_classes: int) -> jax.Array:
    """CORN loss. logits: (N, num_classes-1), y: (N,) int. Returns scalar f32."""
    n, k = logits.shape
    assert k == num_classes - 1 and k >= 1

    # Lane-dense layout: flatten (N, K) row-major into (M, W) slabs, W a multiple
    # of both 128 (lane width) and K (so slab rows hold whole examples).
    w = (128 * k) // math.gcd(128, k)                # lcm(128, k)
    ex_per_row = w // k

    m_needed = max(1, -(-n // ex_per_row))
    block_m = min(BLOCK_M_TARGET, _round_up(m_needed, 32))  # 32: int8/bf16 sublane packing
    m_pad = _round_up(m_needed, block_m)
    grid = (m_pad // block_m,)
    n_pad = m_pad * ex_per_row

    # Logits kept in native dtype (bf16 halves HBM traffic); upcast happens in-kernel.
    logits_p = jnp.zeros((n_pad, k), logits.dtype).at[:n, :].set(logits)
    logits_flat = logits_p.reshape(m_pad, w)

    # Per-element delta (y - task); padded rows get y = -1 so every delta < 0.
    y_p = jnp.full((n_pad,), -1, jnp.int32).at[:n].set(y.astype(jnp.int32))
    delta = y_p[:, None] - jnp.arange(k, dtype=jnp.int32)[None, :]
    d_dtype = jnp.int8 if num_classes <= 128 else jnp.int32
    delta_flat = delta.astype(d_dtype).reshape(m_pad, w)

    partials = pl.pallas_call(
        _corn_kernel,
        out_shape=jax.ShapeDtypeStruct((grid[0], 8, 128), jnp.float32),
        grid_spec=pltpu.PrefetchScalarGridSpec(
            num_scalar_prefetch=0,
            grid=grid,
            in_specs=[
                pl.BlockSpec((block_m, w), lambda i: (i, 0)),
                pl.BlockSpec((block_m, w), lambda i: (i, 0)),
            ],
            out_specs=pl.BlockSpec((1, 8, 128), lambda i: (i, 0, 0)),
        ),
        compiler_params=pltpu.CompilerParams(
            # Each step writes its own partial slot -> fully parallel grid axis
            # (lets both TensorCores work on v7x; no effect on v5e/v6e).
            dimension_semantics=("parallel",),
        ),
    )(logits_flat, delta_flat)

    # Tiny epilogue in XLA (per reviewer guidance): final sum + divide by the
    # number of (example, task) pairs = sum_i min(y_i + 1, K).
    loss_sum = -jnp.sum(partials)
    denom = jnp.sum(jnp.minimum(y.astype(jnp.int32) + 1, k)).astype(jnp.float32)
    return jnp.where(denom > 0, loss_sum / jnp.maximum(denom, 1.0), 0.0)


def corn_loss_ref(logits, y, num_classes):
    """Pure-JAX reference (mirrors the PyTorch loop, vectorized)."""
    n, k = logits.shape
    task = jnp.arange(k, dtype=jnp.int32)[None, :]
    yb = y.astype(jnp.int32)[:, None]
    mask = (yb >= task).astype(jnp.float32)
    label = (yb > task).astype(jnp.float32)
    logsig = jax.nn.log_sigmoid(logits.astype(jnp.float32))
    per = logsig * label + (logsig - logits.astype(jnp.float32)) * (1.0 - label)
    return -jnp.sum(per * mask) / jnp.sum(mask)


if __name__ == "__main__":
    key = jax.random.PRNGKey(0)

    # --- Test A: the spec example (8 examples, 5 classes) --------------------
    NUM_CLASSES = 5
    N = 8
    k_a, k_b, k_c, k_d = jax.random.split(key, 4)
    logits_a = jax.random.normal(k_a, (N, NUM_CLASSES - 1), dtype=jnp.float32)
    y_a = jnp.array([0, 1, 2, 2, 2, 3, 4, 4], dtype=jnp.int32)

    loss_a = jax.block_until_ready(corn_loss_pallas(logits_a, y_a, NUM_CLASSES))
    ref_a = corn_loss_ref(logits_a, y_a, NUM_CLASSES)
    np.testing.assert_allclose(np.asarray(loss_a), np.asarray(ref_a), rtol=1e-5, atol=1e-6)

    # --- Test B: larger batch -> multiple grid steps (parallel partials) -----
    N_B, NC_B = 50000, 5
    logits_b = jax.random.normal(k_b, (N_B, NC_B - 1), dtype=jnp.float32)
    y_b = jax.random.randint(k_c, (N_B,), 0, NC_B, dtype=jnp.int32)
    loss_b = jax.block_until_ready(corn_loss_pallas(logits_b, y_b, NC_B))
    ref_b = corn_loss_ref(logits_b, y_b, NC_B)
    np.testing.assert_allclose(np.asarray(loss_b), np.asarray(ref_b), rtol=1e-4, atol=1e-6)

    # --- Test C: K not a divisor of 128 -> W = lcm(128, K) lane-fold path ----
    N_C, NC_C = 1000, 7
    logits_c = jax.random.normal(k_d, (N_C, NC_C - 1), dtype=jnp.float32)
    y_c = jax.random.randint(k_a, (N_C,), 0, NC_C, dtype=jnp.int32)
    loss_c = jax.block_until_ready(corn_loss_pallas(logits_c, y_c, NC_C))
    ref_c = corn_loss_ref(logits_c, y_c, NC_C)
    np.testing.assert_allclose(np.asarray(loss_c), np.asarray(ref_c), rtol=1e-4, atol=1e-6)

    print("KERNEL_OK")
</pallas_src>

<mosaic_0001>
module attributes {stable_mosaic.version = 11 : i64} {
  func.func @_corn_kernel(%arg0: i32, %arg1: memref<32x128xf32, #tpu.memory_space<vmem>>, %arg2: memref<32x128xi8, #tpu.memory_space<vmem>>, %arg3: memref<1x8x128xf32, #tpu.memory_space<vmem>>) attributes {dimension_semantics = [#tpu.dimension_semantics<parallel>], iteration_bounds = array<i64: 1>, scalar_prefetch = 0 : i64, scratch_operands = 0 : i64, tpu.core_type = #tpu.core_type<tc>, window_params = [{transform_indices = @transform_0, window_bounds = array<i64: 32, 128>}, {transform_indices = @transform_1, window_bounds = array<i64: 32, 128>}, {transform_indices = @transform_2, window_bounds = array<i64: 1, 8, 128>}]} {
    %c0 = arith.constant 0 : index
    %c0_0 = arith.constant 0 : index
    %0 = vector.load %arg1[%c0, %c0_0] : memref<32x128xf32, #tpu.memory_space<vmem>>, vector<32x128xf32>
    %c0_1 = arith.constant 0 : index
    %c0_2 = arith.constant 0 : index
    %1 = vector.load %arg2[%c0_1, %c0_2] : memref<32x128xi8, #tpu.memory_space<vmem>>, vector<32x128xi8>
    %2 = arith.extsi %1 : vector<32x128xi8> to vector<32x128xi32>
    %c0_i32 = arith.constant 0 : i32
    %3 = vector.broadcast %c0_i32 : i32 to vector<32x128xi32>
    %4 = arith.cmpi sge, %2, %3 : vector<32x128xi32>
    %c0_i32_3 = arith.constant 0 : i32
    %5 = vector.broadcast %c0_i32_3 : i32 to vector<32x128xi32>
    %6 = arith.cmpi sgt, %2, %5 : vector<32x128xi32>
    %7 = arith.extui %6 : vector<32x128xi1> to vector<32x128xi32>
    %8 = arith.sitofp %7 : vector<32x128xi32> to vector<32x128xf32>
    %cst = arith.constant 0.000000e+00 : f32
    %9 = vector.broadcast %cst : f32 to vector<32x128xf32>
    %10 = arith.minimumf %0, %9 : vector<32x128xf32>
    %11 = math.absf %0 : vector<32x128xf32>
    %cst_4 = arith.constant 0.000000e+00 : f32
    %12 = vector.broadcast %cst_4 : f32 to vector<32x128xf32>
    %13 = arith.subf %12, %11 : vector<32x128xf32>
    %14 = math.exp %13 : vector<32x128xf32>
    %15 = math.log1p %14 : vector<32x128xf32>
    %16 = arith.subf %10, %15 : vector<32x128xf32>
    %cst_5 = arith.constant 1.000000e+00 : f32
    %17 = vector.broadcast %cst_5 : f32 to vector<32x128xf32>
    %18 = arith.subf %17, %8 : vector<32x128xf32>
    %19 = arith.mulf %0, %18 : vector<32x128xf32>
    %20 = arith.subf %16, %19 : vector<32x128xf32>
    %cst_6 = arith.constant 0.000000e+00 : f32
    %21 = vector.broadcast %cst_6 : f32 to vector<32x128xf32>
    %22 = arith.select %4, %20, %21 : vector<32x128xi1>, vector<32x128xf32>
    %23 = vector.shape_cast %22 : vector<32x128xf32> to vector<4x8x128xf32>
    %cst_7 = arith.constant dense<0.000000e+00> : vector<8x128xf32>
    %24 = vector.multi_reduction <add>, %23, %cst_7 [0] : vector<4x8x128xf32> to vector<8x128xf32>
    %c0_8 = arith.constant 0 : index
    %c0_9 = arith.constant 0 : index
    %c0_10 = arith.constant 0 : index
    %25 = vector.load %arg3[%c0_8, %c0_9, %c0_10] : memref<1x8x128xf32, #tpu.memory_space<vmem>>, vector<1x8x128xf32>
    %26 = vector.shape_cast %25 : vector<1x8x128xf32> to vector<8x128xf32>
    %27 = vector.shape_cast %24 : vector<8x128xf32> to vector<1x8x128xf32>
    tpu.vector_store %arg3[%c0_8, %c0_9, %c0_10], %27 {strides = array<i32>} : memref<1x8x128xf32, #tpu.memory_space<vmem>>, vector<1x8x128xf32>,
    return
  }
  func.func @transform_0(%arg0: i32) -> (i32, i32) {
    %c0_i32 = arith.constant 0 : i32
    %c0_i32_0 = arith.constant 0 : i32
    return %arg0, %c0_i32 : i32, i32
  }
  func.func @transform_1(%arg0: i32) -> (i32, i32) {
    %c0_i32 = arith.constant 0 : i32
    %c0_i32_0 = arith.constant 0 : i32
    return %arg0, %c0_i32 : i32, i32
  }
  func.func @transform_2(%arg0: i32) -> (i32, i32, i32) {
    %c0_i32 = arith.constant 0 : i32
    %c0_i32_0 = arith.constant 0 : i32
    %c0_i32_1 = arith.constant 0 : i32
    return %arg0, %c0_i32, %c0_i32_0 : i32, i32, i32
  }
}

</mosaic_0001>

<llo_original>
// kernel: tpu_custom_call.1
$region0: #{tpu_custom_call.1}
  #allocation0 [shape = 'u32[]', space=smem, size = 0x4, offset = 0x4, fixed_abs, tag = 'smem constant byte address 0x4 - core index']
  #allocation1 [shape = 'u32[144,128]{1,0:T(1,128)}', space=vmem, size = 0x12000, scoped, tag = 'internal scratch']
  %s0 = inlined_call_operand.hbm [shape: f32[32,128], index: 0, kind: input, shape index: {}]
  %s1 = inlined_call_operand.hbm [shape: s8[32,128], index: 1, kind: input, shape index: {}]
  %s2 = inlined_call_operand.hbm [shape: f32[1,8,128], index: 2, kind: output, shape index: {}]
  %s3 = sld [smem:[#allocation0]]
  $region26: #{tpu_custom_call.1} parent=0
    _
  %s5 = ssub.s32 1, %s3
  %s6 = scalar_select 0, %s5, %s3
  $region1: #{tpu_custom_call.1} parent=0
    #allocation2 [shape = 'u8[16384]{0}', space=vmem, size = 0x4000, scoped, tag = 'input window, operand 0, single buffered']
    #allocation3 [shape = 's32[1]{0}', space=sflag, size = 0x4, scoped, tag = 'scoped memory for tpu_custom_call.1']
    #allocation4 [shape = 's32[1]{0}', space=sflag, size = 0x4, scoped, tag = 'scoped memory for tpu_custom_call.1']
    #allocation5 [shape = 'u8[4096]{0}', space=vmem, size = 0x1000, scoped, tag = 'input window, operand 1, single buffered']
    #allocation6 [shape = 's32[1]{0}', space=sflag, size = 0x4, scoped, tag = 'scoped memory for tpu_custom_call.1']
    #allocation7 [shape = 'u8[4096]{0}', space=vmem, size = 0x1000, scoped, tag = 'output window, operand 0, single buffered']
    %7 = vsyncpa [#allocation3], 0
    %8 = vsyncpa [#allocation6], 0
    %9 = vsyncpa [#allocation4], 0
    // Predicated region
    $region2: #{tpu_custom_call.1} parent=1 // pred_check
      _
    $region3: #{tpu_custom_call.1} parent=1 // pred_check_branch
      %11 = sbr.rel (0) target = $region5
    $region4: #{tpu_custom_call.1} parent=1 // pred_region
      %s13 = ssub.s32 512, 512
      %14 = vsyncadd [#allocation3], %s13
      %s15 = sshll.u32 [#allocation2], 4
      %s16 = int_to_ptr.vmem [resolvable:$true] %s15
      %21 = dma.hbm_to_vmem [thread:$0]  %s0, 512, %s16, [#allocation3], 128, 128, 8
    $region5: #{tpu_custom_call.1} parent=1 // pred_fallthru
      _
    // Predicated region
    $region6: #{tpu_custom_call.1} parent=1 // pred_check
      _
    $region7: #{tpu_custom_call.1} parent=1 // pred_check_branch
      %23 = sbr.rel (0) target = $region9
    $region8: #{tpu_custom_call.1} parent=1 // pred_region
      %s25 = ssub.s32 128, 128
      %26 = vsyncadd [#allocation6], %s25
      %s28 = sshll.u32 [#allocation5], 4
      %s29 = int_to_ptr.vmem [resolvable:$true] %s28
      %31 = dma.hbm_to_vmem [thread:$0]  %s1, 128, %s29, [#allocation6]
    $region9: #{tpu_custom_call.1} parent=1 // pred_fallthru
      _
    // Predicated region
    $region10: #{tpu_custom_call.1} parent=1 // pred_check
      _
    $region11: #{tpu_custom_call.1} parent=1 // pred_check_branch
      %33 = sbr.rel (0) target = $region13
    $region12: #{tpu_custom_call.1} parent=1 // pred_region
      %34 = dma.done [#allocation3], 512
    $region13: #{tpu_custom_call.1} parent=1 // pred_fallthru
      _
    // Predicated region
    $region14: #{tpu_custom_call.1} parent=1 // pred_check
      _
    $region15: #{tpu_custom_call.1} parent=1 // pred_check_branch
      %36 = sbr.rel (0) target = $region17
    $region16: #{tpu_custom_call.1} parent=1 // pred_region
      %37 = dma.done [#allocation6], 128
    $region17: #{tpu_custom_call.1} parent=1 // pred_fallthru
      _
    %v38 = vld [vmem:[#allocation2] sm:$0xff]
    %v39 = vld [vmem:[#allocation2 + $0x8] sm:$0xff]
    %v40 = vld [vmem:[#allocation2 + $0x10] sm:$0xff]
    %v41 = vld [vmem:[#allocation2 + $0x18] sm:$0xff]
    %v42 = vld [vmem:[#allocation5] sm:$0xff]
    %v43 = vunpack.c.0.s8 %v42
    %v44 = vunpack.c.1.s8 %v42
    %v45 = vunpack.c.2.s8 %v42
    %v46 = vunpack.c.3.s8 %v42
    %vm47 = vcmp.ge.s32.totalorder %v43, 0
    %vm48 = vcmp.ge.s32.totalorder %v44, 0
    %vm49 = vcmp.ge.s32.totalorder %v45, 0
    %vm50 = vcmp.ge.s32.totalorder %v46, 0
    %vm51 = vcmp.gt.s32.totalorder %v43, 0
    %vm52 = vcmp.gt.s32.totalorder %v44, 0
    %vm53 = vcmp.gt.s32.totalorder %v45, 0
    %vm54 = vcmp.gt.s32.totalorder %v46, 0
    %v55 = vsel %vm51, 1, 0
    %v56 = vsel %vm52, 1, 0
    %v57 = vsel %vm53, 1, 0
    %v58 = vsel %vm54, 1, 0
    %v59 = vcvt.s32.f32 %v55
    %v60 = vcvt.s32.f32 %v56
    %v61 = vcvt.s32.f32 %v57
    %v62 = vcvt.s32.f32 %v58
    %v63 = vmin.f32 %v38, 0.0
    %v64 = vmin.f32 %v39, 0.0
    %v65 = vmin.f32 %v40, 0.0
    %v66 = vmin.f32 %v41, 0.0
    %v67 = vand.u32 2147483647, %v38
    %v68 = vand.u32 2147483647, %v39
    %v69 = vand.u32 2147483647, %v40
    %v70 = vand.u32 2147483647, %v41
    %v71 = vsub.f32 0.0, %v67
    %v72 = vsub.f32 0.0, %v68
    %v73 = vsub.f32 0.0, %v69
    %v74 = vsub.f32 0.0, %v70
    %v75 = vmul.f32 %v71, 1.442695
    %v76 = vpow.pop %v75
    %v77 = vmul.f32 %v72, 1.442695
    %v78 = vpow.pop %v77
    %v79 = vmul.f32 %v73, 1.442695
    %v80 = vpow.pop %v79
    %v81 = vmul.f32 %v74, 1.442695
    %v82 = vpow.pop %v81
    %v83 = vadd.f32 %v76, 1.0
    %v84 = vlog2.pop %v83
    %v85 = vmul.f32 %v84, 0.6931472
    %v86 = vmul.f32 -0.5, %v76
    %v87 = vadd.f32 %v86, 1.0
    %v88 = vmul.f32 %v87, %v76
    %v89 = vand.u32 2147483647, %v76
    %vm90 = vcmp.lt.f32.partialorder %v89, 0.0004427343
    %v91 = vsel %vm90, %v88, %v85
    %v92 = vadd.f32 %v78, 1.0
    %v93 = vlog2.pop %v92
    %v94 = vmul.f32 %v93, 0.6931472
    %v95 = vmul.f32 -0.5, %v78
    %v96 = vadd.f32 %v95, 1.0
    %v97 = vmul.f32 %v96, %v78
    %v98 = vand.u32 2147483647, %v78
    %vm99 = vcmp.lt.f32.partialorder %v98, 0.0004427343
    %v100 = vsel %vm99, %v97, %v94
    %v101 = vadd.f32 %v80, 1.0
    %v102 = vlog2.pop %v101
    %v103 = vmul.f32 %v102, 0.6931472
    %v104 = vmul.f32 -0.5, %v80
    %v105 = vadd.f32 %v104, 1.0
    %v106 = vmul.f32 %v105, %v80
    %v107 = vand.u32 2147483647, %v80
    %vm108 = vcmp.lt.f32.partialorder %v107, 0.0004427343
    %v109 = vsel %vm108, %v106, %v103
    %v110 = vadd.f32 %v82, 1.0
    %v111 = vlog2.pop %v110
    %v112 = vmul.f32 %v111, 0.6931472
    %v113 = vmul.f32 -0.5, %v82
    %v114 = vadd.f32 %v113, 1.0
    %v115 = vmul.f32 %v114, %v82
    %v116 = vand.u32 2147483647, %v82
    %vm117 = vcmp.lt.f32.partialorder %v116, 0.0004427343
    %v118 = vsel %vm117, %v115, %v112
    %v119 = vsub.f32 %v63, %v91
    %v120 = vsub.f32 %v64, %v100
    %v121 = vsub.f32 %v65, %v109
    %v122 = vsub.f32 %v66, %v118
    %v123 = vsub.f32 1.0, %v59
    %v124 = vsub.f32 1.0, %v60
    %v125 = vsub.f32 1.0, %v61
    %v126 = vsub.f32 1.0, %v62
    %v127 = vmul.f32 %v38, %v123
    %v128 = vmul.f32 %v39, %v124
    %v129 = vmul.f32 %v40, %v125
    %v130 = vmul.f32 %v41, %v126
    %v131 = vsub.f32 %v119, %v127
    %v132 = vsub.f32 %v120, %v128
    %v133 = vsub.f32 %v121, %v129
    %v134 = vsub.f32 %v122, %v130
    %v135 = vsel %vm47, %v131, 0.0
    %v136 = vsel %vm48, %v132, 0.0
    %v137 = vsel %vm49, %v133, 0.0
    %v138 = vsel %vm50, %v134, 0.0
    %v139 = vadd.f32 %v135, %v136
    %v140 = vadd.f32 %v139, %v137
    %v141 = vadd.f32 %v140, %v138
    %142 = vst [vmem:[#allocation7] sm:$0xff] %v141
    // Predicated region
    $region18: #{tpu_custom_call.1} parent=1 // pred_check
      _
    $region19: #{tpu_custom_call.1} parent=1 // pred_check_branch
      %144 = sbr.rel (0) target = $region21
    $region20: #{tpu_custom_call.1} parent=1 // pred_region
      %s146 = ssub.s32 128, 128
      %147 = vsyncadd [#allocation4], %s146
      %s149 = sshll.u32 [#allocation7], 4
      %s150 = int_to_ptr.vmem [resolvable:$true] %s149
      %152 = dma.vmem_to_hbm [thread:$0]  %s150, 128, %s2, [#allocation4]
    $region21: #{tpu_custom_call.1} parent=1 // pred_fallthru
      _
    // Predicated region
    $region22: #{tpu_custom_call.1} parent=1 // pred_check
      _
    $region23: #{tpu_custom_call.1} parent=1 // pred_check_branch
      %154 = sbr.rel (0) target = $region25
    $region24: #{tpu_custom_call.1} parent=1 // pred_region
      %155 = dma.done [#allocation4], 128
    $region25: #{tpu_custom_call.1} parent=1 // pred_fallthru
      _
    %156 = vsyncpa [#allocation3], 1
    %157 = vsyncpa [#allocation6], 1
    %158 = vsyncpa [#allocation4], 1

</llo_original>
